<compile_context>
chip_gen: v5e
topology: v5e:2x2
jax: 0.10.0
libtpu: 0.0.40
codegen_flags: <defaults>
</compile_context>

<pallas_src>
import functools

import jax
import jax.numpy as jnp
import numpy as np
from jax.experimental import pallas as pl
from jax.experimental.pallas import tpu as pltpu

_EPS_LN = 1e-5   # nn.LayerNorm default eps
_EPS_BN = 1e-5   # nn.BatchNorm1d default eps
_LANE = 128      # TPU lane width: slab padded to full lanes for dense DMA/loads


# ---------------------------------------------------------------------------
# packed-parameter layout
# ---------------------------------------------------------------------------
def _align8(n):
    return (n + 7) // 8 * 8


def _layout(H, HV, HP, S, A, V):
    # sublane-alignment guard (review): weight blocks are loaded as whole
    # row-range slices starting at 8-aligned offsets; widths below only affect
    # lane masking, but keep H a multiple of 8 so branch halves stay sane.
    assert H % 8 == 0, "hidden_shape must be a multiple of 8 (pad upstream)"
    H2 = 2 * H                 # fused residual width (value | policy)
    HB = V * HV + HP           # fused head hidden width
    VS = V * S                 # all value supports, lane-concatenated
    OUT = VS + 2 * A           # fused head output width (values | mu | pre-std)
    # lane-dense slab width: at least 128 and a multiple of 128
    W = max(_LANE, -(-max(H2, HB, OUT) // _LANE) * _LANE)
    # vector rows 0..13, matrices start at 8-aligned sublane offsets
    R_W1 = _align8(14)               # block-diag residual Linear1  (2H, 2H)
    R_W2 = _align8(R_W1 + H2)        # block-diag residual Linear2  (2H, 2H)
    R_WH1 = _align8(R_W2 + H2)       # fused head Linear1           (2H, HB)
    R_WH2 = _align8(R_WH1 + H2)      # block-diag head Linear2      (HB, OUT)
    R_TOT = _align8(R_WH2 + HB)
    return dict(H2=H2, HB=HB, VS=VS, OUT=OUT, W=W,
                R_W1=R_W1, R_W2=R_W2, R_WH1=R_WH1, R_WH2=R_WH2, R_TOT=R_TOT)


# vector-row indices inside the slab
# 0 vr_ln_g | 1 vr_ln_b | 2 pr_ln_g | 3 pr_ln_b | 4 val_ln_g | 5 val_ln_b
# 6 pi_ln_g | 7 pi_ln_b | 8 res_b1 (2H) | 9 res_b2 (2H)
# 10 head_b1 (HB) | 11 head_bn_g (HB) | 12 head_bn_b (HB) | 13 head_b2 (OUT)


def pack_params(p):
    """Pack the 28 torch-style parameter arrays into one contiguous f32 slab."""
    V, H, HV = np.asarray(p["vn_w1"]).shape
    HP = np.asarray(p["pn_w1"]).shape[1]
    S = np.asarray(p["vn_w2"]).shape[2]
    A = np.asarray(p["pn_w2"]).shape[1] // 2
    dims = (H, HV, HP, S, A, V)
    L = _layout(*dims)

    slab = np.zeros((L["R_TOT"], L["W"]), np.float32)

    def put_row(r, v):
        v = np.asarray(v, np.float32).reshape(-1)
        slab[r, : v.shape[0]] = v

    def put_mat(r0, c0, m):
        m = np.asarray(m, np.float32)
        slab[r0:r0 + m.shape[0], c0:c0 + m.shape[1]] = m

    # --- vector rows ---
    put_row(0, p["vr_lng"]); put_row(1, p["vr_lnb"])
    put_row(2, p["pr_lng"]); put_row(3, p["pr_lnb"])
    put_row(4, p["vln_g"]);  put_row(5, p["vln_b"])
    put_row(6, p["pln_g"]);  put_row(7, p["pln_b"])
    put_row(8, np.concatenate([np.asarray(p["vr_b1"]).reshape(-1),
                               np.asarray(p["pr_b1"]).reshape(-1)]))
    put_row(9, np.concatenate([np.asarray(p["vr_b2"]).reshape(-1),
                               np.asarray(p["pr_b2"]).reshape(-1)]))
    put_row(10, np.concatenate([np.asarray(p["vn_b1"]).reshape(-1),
                                np.asarray(p["pn_b1"]).reshape(-1)]))
    put_row(11, np.concatenate([np.asarray(p["vn_bng"]).reshape(-1),
                                np.asarray(p["pn_bng"]).reshape(-1)]))
    put_row(12, np.concatenate([np.asarray(p["vn_bnb"]).reshape(-1),
                                np.asarray(p["pn_bnb"]).reshape(-1)]))
    put_row(13, np.concatenate([np.asarray(p["vn_b2"]).reshape(-1),
                                np.asarray(p["pn_b2"]).reshape(-1)]))

    # --- residual-block weights, block-diagonal across value/policy branch ---
    put_mat(L["R_W1"], 0, p["vr_w1"]); put_mat(L["R_W1"] + H, H, p["pr_w1"])
    put_mat(L["R_W2"], 0, p["vr_w2"]); put_mat(L["R_W2"] + H, H, p["pr_w2"])
    # --- fused head first layer (2H, V*HV + HP) ---
    for i in range(V):
        put_mat(L["R_WH1"], i * HV, np.asarray(p["vn_w1"])[i])
    put_mat(L["R_WH1"] + H, V * HV, p["pn_w1"])
    # --- fused head second layer, block-diagonal (V*HV + HP, V*S + 2A) ---
    for i in range(V):
        put_mat(L["R_WH2"] + i * HV, i * S, np.asarray(p["vn_w2"])[i])
    put_mat(L["R_WH2"] + V * HV, V * S, p["pn_w2"])

    return jnp.asarray(slab), dims


# ---------------------------------------------------------------------------
# the Pallas kernel (one grid point)
# ---------------------------------------------------------------------------
def _make_kernel(H, HV, HP, S, A, V, use_bf16):
    L = _layout(H, HV, HP, S, A, V)
    H2, HB, VS, OUT = L["H2"], L["HB"], L["VS"], L["OUT"]
    R_W1, R_W2, R_WH1, R_WH2 = L["R_W1"], L["R_W2"], L["R_WH1"], L["R_WH2"]
    mm_dtype = jnp.bfloat16 if use_bf16 else jnp.float32

    def mm(a, w):
        # bf16 operands -> single MXU pass; accumulation stays f32 either way.
        return jnp.dot(a.astype(mm_dtype), w.astype(mm_dtype),
                       preferred_element_type=jnp.float32)

    def ln(y, g, b):
        m = jnp.mean(y, axis=-1, keepdims=True)
        vv = jnp.mean((y - m) ** 2, axis=-1, keepdims=True)
        return (y - m) * jax.lax.rsqrt(vv + _EPS_LN) * g + b

    def kernel(x_ref, p_ref, val_ref, pol_ref):
        x = x_ref[...]                                        # (B, H)

        # shared LayerNorm statistics (vr and pr LayerNorms see the same x)
        mu = jnp.mean(x, axis=-1, keepdims=True)
        var = jnp.mean((x - mu) ** 2, axis=-1, keepdims=True)
        xn = (x - mu) * jax.lax.rsqrt(var + _EPS_LN)

        # fused residual blocks: lane-concat the two affine LN outputs (the one
        # concat the block-diagonal matmul genuinely needs)
        h0 = jnp.concatenate(
            [xn * p_ref[0:1, :H] + p_ref[1:2, :H],
             xn * p_ref[2:3, :H] + p_ref[3:4, :H]], axis=-1)  # (B, 2H)

        h1 = jnp.maximum(mm(h0, p_ref[R_W1:R_W1 + H2, :H2]) + p_ref[8:9, :H2],
                         0.0)
        h2 = mm(h1, p_ref[R_W2:R_W2 + H2, :H2]) + p_ref[9:10, :H2]

        # residual add per branch half (no concat([x, x])), then post-LN
        v = ln(h2[:, :H] + x, p_ref[4:5, :H], p_ref[5:6, :H])      # val_ln
        q = ln(h2[:, H:] + x, p_ref[6:7, :H], p_ref[7:8, :H])      # pi_ln

        # fused heads: one matmul for the v_num value heads + the pi head
        vp = jnp.concatenate([v, q], axis=-1)                      # (B, 2H)
        z = mm(vp, p_ref[R_WH1:R_WH1 + H2, :HB]) + p_ref[10:11, :HB]

        # BatchNorm1d (training mode, biased batch statistics); per-column,
        # so one BN over the concatenation == per-head BN.
        # TODO(synk): running_mean/running_var updates (training side effect)
        # are not reproduced; only the forward normalization is.
        bm = jnp.mean(z, axis=0, keepdims=True)
        bv = jnp.mean((z - bm) ** 2, axis=0, keepdims=True)
        z = (z - bm) * jax.lax.rsqrt(bv + _EPS_BN) * p_ref[11:12, :HB] \
            + p_ref[12:13, :HB]
        z = jnp.maximum(z, 0.0)

        # fused second layers -> (B, V*S + 2A)
        o = mm(z, p_ref[R_WH2:R_WH2 + HB, :OUT]) + p_ref[13:14, :OUT]

        # values written directly in (V, B, S) layout: kills the wrapper
        # transpose/reshape.  V is small and static -> this loop unrolls.
        for i in range(V):
            val_ref[i, :, :] = o[:, i * S:(i + 1) * S]

        # squashed-gaussian epilogue on the policy columns only; direct
        # slice-stores (no output concatenate).  tanh/exp ride the EUP slot.
        mu_p = 5.0 * jnp.tanh(o[:, VS:VS + A] * (1.0 / 5.0))      # squashed mean
        s_in = o[:, VS + A:VS + 2 * A] + 1.0                       # init_std = 1.0
        std_p = jnp.maximum(s_in, 0.0) + jnp.log1p(jnp.exp(-jnp.abs(s_in))) + 0.1
        pol_ref[:, :A] = mu_p
        pol_ref[:, A:] = std_p

    return kernel


@functools.partial(jax.jit, static_argnums=(2, 3))
def value_policy_forward(x, packed, dims, use_bf16):
    """Returns (values (v_num, B, support), policy (B, 2A)) straight from the
    kernel -- no XLA-side reshape/transpose.  B up to ~128 (v5e) / 256 (v6e/v7x)
    amortizes the fixed pallas_call overhead for ~constant wall time."""
    H, HV, HP, S, A, V = dims
    L = _layout(H, HV, HP, S, A, V)
    B = x.shape[0]
    H2, HB, OUT = L["H2"], L["HB"], L["OUT"]

    flops = 2 * B * (H2 * H2 + H2 * H2 + H2 * HB + HB * OUT) + 40 * B * H2
    transcendentals = 4 * B + HB + 3 * B * A           # rsqrt + tanh + exp/log1p
    bytes_accessed = 4 * (B * H + L["R_TOT"] * L["W"] + V * B * S + 2 * B * A)

    vmem = pl.BlockSpec(memory_space=pltpu.MemorySpace.VMEM)
    values, policy = pl.pallas_call(
        _make_kernel(H, HV, HP, S, A, V, use_bf16),
        out_shape=(jax.ShapeDtypeStruct((V, B, S), jnp.float32),
                   jax.ShapeDtypeStruct((B, 2 * A), jnp.float32)),
        in_specs=[vmem, vmem],
        out_specs=(vmem, vmem),
        cost_estimate=pl.CostEstimate(flops=flops,
                                      transcendentals=transcendentals,
                                      bytes_accessed=bytes_accessed),
    )(x, packed)
    return values, policy


# ---------------------------------------------------------------------------
# deterministic parameter construction (PyTorch-style uniform(+-1/sqrt(fan_in)))
# ---------------------------------------------------------------------------
def _linear_params(key, fan_in, fan_out):
    k1, k2 = jax.random.split(key)
    bound = 1.0 / np.sqrt(fan_in)
    w = jax.random.uniform(k1, (fan_in, fan_out), jnp.float32, -bound, bound)
    b = jax.random.uniform(k2, (1, fan_out), jnp.float32, -bound, bound)
    return w, b


def init_params(key, hidden, val_hidden, pi_hidden, support, action, v_num):
    keys = iter(jax.random.split(key, 8 + 2 * v_num))
    p = {}
    p["vr_lng"], p["vr_lnb"] = jnp.ones((1, hidden)), jnp.zeros((1, hidden))
    p["vr_w1"], p["vr_b1"] = _linear_params(next(keys), hidden, hidden)
    p["vr_w2"], p["vr_b2"] = _linear_params(next(keys), hidden, hidden)
    p["vln_g"], p["vln_b"] = jnp.ones((1, hidden)), jnp.zeros((1, hidden))
    p["pr_lng"], p["pr_lnb"] = jnp.ones((1, hidden)), jnp.zeros((1, hidden))
    p["pr_w1"], p["pr_b1"] = _linear_params(next(keys), hidden, hidden)
    p["pr_w2"], p["pr_b2"] = _linear_params(next(keys), hidden, hidden)
    p["pln_g"], p["pln_b"] = jnp.ones((1, hidden)), jnp.zeros((1, hidden))
    w1s, b1s, w2s, b2s = [], [], [], []
    for _ in range(v_num):
        w1, b1 = _linear_params(next(keys), hidden, val_hidden)
        w2, b2 = _linear_params(next(keys), val_hidden, support)
        w1s.append(w1); b1s.append(b1); w2s.append(w2); b2s.append(b2)
    p["vn_w1"], p["vn_b1"] = jnp.stack(w1s), jnp.stack(b1s)
    p["vn_bng"] = jnp.ones((v_num, 1, val_hidden))
    p["vn_bnb"] = jnp.zeros((v_num, 1, val_hidden))
    p["vn_w2"], p["vn_b2"] = jnp.stack(w2s), jnp.stack(b2s)
    p["pn_w1"], p["pn_b1"] = _linear_params(next(keys), hidden, pi_hidden)
    p["pn_bng"] = jnp.ones((1, pi_hidden))
    p["pn_bnb"] = jnp.zeros((1, pi_hidden))
    p["pn_w2"], p["pn_b2"] = _linear_params(next(keys), pi_hidden, 2 * action)
    return p


# ---------------------------------------------------------------------------
# pure-JAX reference (unfused, torch layout) for correctness checking
# ---------------------------------------------------------------------------
def _layer_norm(x, g, b):
    mu = jnp.mean(x, axis=-1, keepdims=True)
    var = jnp.mean((x - mu) ** 2, axis=-1, keepdims=True)
    return (x - mu) * jax.lax.rsqrt(var + _EPS_LN) * g + b


def _batch_norm_train(x, g, b):
    mu = jnp.mean(x, axis=0, keepdims=True)
    var = jnp.mean((x - mu) ** 2, axis=0, keepdims=True)
    return (x - mu) * jax.lax.rsqrt(var + _EPS_BN) * g + b


def _softplus(x):
    return jnp.maximum(x, 0.0) + jnp.log1p(jnp.exp(-jnp.abs(x)))


def reference_forward(x, p, matmul_dtype=jnp.float32):
    def mm(a, w):
        return jnp.dot(a.astype(matmul_dtype), w.astype(matmul_dtype),
                       preferred_element_type=jnp.float32)

    h = _layer_norm(x, p["vr_lng"], p["vr_lnb"])
    h = jnp.maximum(mm(h, p["vr_w1"]) + p["vr_b1"], 0.0)
    h = mm(h, p["vr_w2"]) + p["vr_b2"]
    v = _layer_norm(x + h, p["vln_g"], p["vln_b"])
    vals = []
    for i in range(p["vn_w1"].shape[0]):
        z = mm(v, p["vn_w1"][i]) + p["vn_b1"][i]
        z = jnp.maximum(_batch_norm_train(z, p["vn_bng"][i], p["vn_bnb"][i]), 0.0)
        vals.append(mm(z, p["vn_w2"][i]) + p["vn_b2"][i])
    values = jnp.stack(vals)

    q = _layer_norm(x, p["pr_lng"], p["pr_lnb"])
    q = jnp.maximum(mm(q, p["pr_w1"]) + p["pr_b1"], 0.0)
    q = mm(q, p["pr_w2"]) + p["pr_b2"]
    q = _layer_norm(x + q, p["pln_g"], p["pln_b"])
    z = mm(q, p["pn_w1"]) + p["pn_b1"]
    z = jnp.maximum(_batch_norm_train(z, p["pn_bng"], p["pn_bnb"]), 0.0)
    z = mm(z, p["pn_w2"]) + p["pn_b2"]
    a = z.shape[-1] // 2
    mu = 5.0 * jnp.tanh(z[:, :a] / 5.0)
    std = _softplus(z[:, a:] + 1.0) + 0.1
    return values, jnp.concatenate([mu, std], axis=-1)


if __name__ == "__main__":
    B, HIDDEN = 8, 32              # batch, hidden_shape
    VAL_HIDDEN, PI_HIDDEN = 32, 32  # val_net_shape=[32], pi_net_shape=[32]
    SUPPORT = 21                   # full_support_size
    ACTION = 4                     # action_shape
    V_NUM = 2                      # kwargs['v_num']

    key = jax.random.PRNGKey(0)
    kx, kp = jax.random.split(key)
    x = jax.random.normal(kx, (B, HIDDEN), jnp.float32)
    params = init_params(kp, HIDDEN, VAL_HIDDEN, PI_HIDDEN, SUPPORT, ACTION, V_NUM)

    packed, dims = pack_params(params)   # packed once, outside the hot path

    # --- exact path: f32 MXU operands, tight parity with the f32 reference ---
    values, policy = value_policy_forward(x, packed, dims, False)
    jax.block_until_ready((values, policy))
    assert values.shape == (V_NUM, B, SUPPORT)
    assert policy.shape == (B, 2 * ACTION)
    ref_values, ref_policy = reference_forward(x, params)
    np.testing.assert_allclose(np.asarray(values), np.asarray(ref_values),
                               rtol=1e-4, atol=1e-4)
    np.testing.assert_allclose(np.asarray(policy), np.asarray(ref_policy),
                               rtol=1e-4, atol=1e-4)

    # --- fast path: bf16 MXU operands (single MXU pass per dot).  Checked
    # against a reference that also rounds matmul operands to bf16; the slack
    # covers fusion/accumulation-order differences through the BatchNorm.
    values_bf, policy_bf = value_policy_forward(x, packed, dims, True)
    jax.block_until_ready((values_bf, policy_bf))
    ref_values_bf, ref_policy_bf = reference_forward(x, params, jnp.bfloat16)
    np.testing.assert_allclose(np.asarray(values_bf), np.asarray(ref_values_bf),
                               rtol=2e-2, atol=2e-2)
    np.testing.assert_allclose(np.asarray(policy_bf), np.asarray(ref_policy_bf),
                               rtol=2e-2, atol=2e-2)

    print("KERNEL_OK")
</pallas_src>

<mosaic_0001>
module attributes {stable_mosaic.version = 11 : i64} {
  func.func @kernel(%arg0: memref<8x32xf32, #tpu.memory_space<vmem>>, %arg1: memref<304x128xf32, #tpu.memory_space<vmem>>, %arg2: memref<2x8x21xf32, #tpu.memory_space<vmem>>, %arg3: memref<8x8xf32, #tpu.memory_space<vmem>>) attributes {dimension_semantics = [], scalar_prefetch = 0 : i64, scratch_operands = 0 : i64, tpu.core_type = #tpu.core_type<tc>} {
    %c0 = arith.constant 0 : index
    %c0_0 = arith.constant 0 : index
    %0 = vector.load %arg0[%c0, %c0_0] : memref<8x32xf32, #tpu.memory_space<vmem>>, vector<8x32xf32>
    %cst = arith.constant dense<0.000000e+00> : vector<8xf32>
    %1 = vector.multi_reduction <add>, %0, %cst [1] : vector<8x32xf32> to vector<8xf32>
    %2 = vector.shape_cast %1 : vector<8xf32> to vector<8x1xf32>
    %cst_1 = arith.constant 3.200000e+01 : f32
    %3 = vector.broadcast %cst_1 : f32 to vector<8x1xf32>
    %4 = arith.divf %2, %3 : vector<8x1xf32>
    %5 = vector.broadcast %4 : vector<8x1xf32> to vector<8x32xf32>
    %6 = arith.subf %0, %5 : vector<8x32xf32>
    %7 = arith.mulf %6, %6 : vector<8x32xf32>
    %cst_2 = arith.constant dense<0.000000e+00> : vector<8xf32>
    %8 = vector.multi_reduction <add>, %7, %cst_2 [1] : vector<8x32xf32> to vector<8xf32>
    %9 = vector.shape_cast %8 : vector<8xf32> to vector<8x1xf32>
    %cst_3 = arith.constant 3.200000e+01 : f32
    %10 = vector.broadcast %cst_3 : f32 to vector<8x1xf32>
    %11 = arith.divf %9, %10 : vector<8x1xf32>
    %12 = vector.broadcast %4 : vector<8x1xf32> to vector<8x32xf32>
    %13 = arith.subf %0, %12 : vector<8x32xf32>
    %cst_4 = arith.constant 9.99999974E-6 : f32
    %14 = vector.broadcast %cst_4 : f32 to vector<8x1xf32>
    %15 = arith.addf %11, %14 : vector<8x1xf32>
    %16 = math.rsqrt %15 : vector<8x1xf32>
    %17 = vector.broadcast %16 : vector<8x1xf32> to vector<8x32xf32>
    %18 = arith.mulf %13, %17 : vector<8x32xf32>
    %c0_5 = arith.constant 0 : index
    %c0_6 = arith.constant 0 : index
    %19 = vector.load %arg1[%c0_5, %c0_6] : memref<304x128xf32, #tpu.memory_space<vmem>>, vector<1x32xf32>
    %20 = vector.broadcast %19 : vector<1x32xf32> to vector<8x32xf32>
    %21 = arith.mulf %18, %20 : vector<8x32xf32>
    %c1 = arith.constant 1 : index
    %c0_7 = arith.constant 0 : index
    %22 = vector.load %arg1[%c1, %c0_7] : memref<304x128xf32, #tpu.memory_space<vmem>>, vector<1x32xf32>
    %23 = vector.broadcast %22 : vector<1x32xf32> to vector<8x32xf32>
    %24 = arith.addf %21, %23 : vector<8x32xf32>
    %c2 = arith.constant 2 : index
    %c0_8 = arith.constant 0 : index
    %25 = vector.load %arg1[%c2, %c0_8] : memref<304x128xf32, #tpu.memory_space<vmem>>, vector<1x32xf32>
    %26 = vector.broadcast %25 : vector<1x32xf32> to vector<8x32xf32>
    %27 = arith.mulf %18, %26 : vector<8x32xf32>
    %c3 = arith.constant 3 : index
    %c0_9 = arith.constant 0 : index
    %28 = vector.load %arg1[%c3, %c0_9] : memref<304x128xf32, #tpu.memory_space<vmem>>, vector<1x32xf32>
    %29 = vector.broadcast %28 : vector<1x32xf32> to vector<8x32xf32>
    %30 = arith.addf %27, %29 : vector<8x32xf32>
    %31 = tpu.concatenate %24, %30 in 1 : vector<8x32xf32>, vector<8x32xf32> -> vector<8x64xf32>
    %c16 = arith.constant 16 : index
    %c0_10 = arith.constant 0 : index
    %32 = vector.load %arg1[%c16, %c0_10] : memref<304x128xf32, #tpu.memory_space<vmem>>, vector<64x64xf32>
    %cst_11 = arith.constant dense<0.000000e+00> : vector<8x64xf32>
    %33 = tpu.matmul %31, %32, %cst_11 {dimension_numbers = #tpu.dot_dimension_numbers<[1], [0], [0], [1], [0, 0, 1, 1], [], []>} : vector<8x64xf32>, vector<64x64xf32>, vector<8x64xf32> -> vector<8x64xf32>
    %c8 = arith.constant 8 : index
    %c0_12 = arith.constant 0 : index
    %34 = vector.load %arg1[%c8, %c0_12] : memref<304x128xf32, #tpu.memory_space<vmem>>, vector<1x64xf32>
    %35 = vector.broadcast %34 : vector<1x64xf32> to vector<8x64xf32>
    %36 = arith.addf %33, %35 : vector<8x64xf32>
    %cst_13 = arith.constant 0.000000e+00 : f32
    %37 = vector.broadcast %cst_13 : f32 to vector<8x64xf32>
    %38 = arith.maximumf %36, %37 : vector<8x64xf32>
    %c80 = arith.constant 80 : index
    %c0_14 = arith.constant 0 : index
    %39 = vector.load %arg1[%c80, %c0_14] : memref<304x128xf32, #tpu.memory_space<vmem>>, vector<64x64xf32>
    %cst_15 = arith.constant dense<0.000000e+00> : vector<8x64xf32>
    %40 = tpu.matmul %38, %39, %cst_15 {dimension_numbers = #tpu.dot_dimension_numbers<[1], [0], [0], [1], [0, 0, 1, 1], [], []>} : vector<8x64xf32>, vector<64x64xf32>, vector<8x64xf32> -> vector<8x64xf32>
    %c9 = arith.constant 9 : index
    %c0_16 = arith.constant 0 : index
    %41 = vector.load %arg1[%c9, %c0_16] : memref<304x128xf32, #tpu.memory_space<vmem>>, vector<1x64xf32>
    %42 = vector.broadcast %41 : vector<1x64xf32> to vector<8x64xf32>
    %43 = arith.addf %40, %42 : vector<8x64xf32>
    %44 = vector.extract_strided_slice %43 {offsets = [0, 0], sizes = [8, 32], strides = [1, 1]} : vector<8x64xf32> to vector<8x32xf32>
    %45 = arith.addf %44, %0 : vector<8x32xf32>
    %c4 = arith.constant 4 : index
    %c0_17 = arith.constant 0 : index
    %46 = vector.load %arg1[%c4, %c0_17] : memref<304x128xf32, #tpu.memory_space<vmem>>, vector<1x32xf32>
    %c5 = arith.constant 5 : index
    %c0_18 = arith.constant 0 : index
    %47 = vector.load %arg1[%c5, %c0_18] : memref<304x128xf32, #tpu.memory_space<vmem>>, vector<1x32xf32>
    %cst_19 = arith.constant dense<0.000000e+00> : vector<8xf32>
    %48 = vector.multi_reduction <add>, %45, %cst_19 [1] : vector<8x32xf32> to vector<8xf32>
    %49 = vector.shape_cast %48 : vector<8xf32> to vector<8x1xf32>
    %cst_20 = arith.constant 3.200000e+01 : f32
    %50 = vector.broadcast %cst_20 : f32 to vector<8x1xf32>
    %51 = arith.divf %49, %50 : vector<8x1xf32>
    %52 = vector.broadcast %51 : vector<8x1xf32> to vector<8x32xf32>
    %53 = arith.subf %45, %52 : vector<8x32xf32>
    %54 = arith.mulf %53, %53 : vector<8x32xf32>
    %cst_21 = arith.constant dense<0.000000e+00> : vector<8xf32>
    %55 = vector.multi_reduction <add>, %54, %cst_21 [1] : vector<8x32xf32> to vector<8xf32>
    %56 = vector.shape_cast %55 : vector<8xf32> to vector<8x1xf32>
    %cst_22 = arith.constant 3.200000e+01 : f32
    %57 = vector.broadcast %cst_22 : f32 to vector<8x1xf32>
    %58 = arith.divf %56, %57 : vector<8x1xf32>
    %59 = vector.broadcast %51 : vector<8x1xf32> to vector<8x32xf32>
    %60 = arith.subf %45, %59 : vector<8x32xf32>
    %cst_23 = arith.constant 9.99999974E-6 : f32
    %61 = vector.broadcast %cst_23 : f32 to vector<8x1xf32>
    %62 = arith.addf %58, %61 : vector<8x1xf32>
    %63 = math.rsqrt %62 : vector<8x1xf32>
    %64 = vector.broadcast %63 : vector<8x1xf32> to vector<8x32xf32>
    %65 = arith.mulf %60, %64 : vector<8x32xf32>
    %66 = vector.broadcast %46 : vector<1x32xf32> to vector<8x32xf32>
    %67 = arith.mulf %65, %66 : vector<8x32xf32>
    %68 = vector.broadcast %47 : vector<1x32xf32> to vector<8x32xf32>
    %69 = arith.addf %67, %68 : vector<8x32xf32>
    %70 = vector.extract_strided_slice %43 {offsets = [0, 32], sizes = [8, 32], strides = [1, 1]} : vector<8x64xf32> to vector<8x32xf32>
    %71 = arith.addf %70, %0 : vector<8x32xf32>
    %c6 = arith.constant 6 : index
    %c0_24 = arith.constant 0 : index
    %72 = vector.load %arg1[%c6, %c0_24] : memref<304x128xf32, #tpu.memory_space<vmem>>, vector<1x32xf32>
    %c7 = arith.constant 7 : index
    %c0_25 = arith.constant 0 : index
    %73 = vector.load %arg1[%c7, %c0_25] : memref<304x128xf32, #tpu.memory_space<vmem>>, vector<1x32xf32>
    %cst_26 = arith.constant dense<0.000000e+00> : vector<8xf32>
    %74 = vector.multi_reduction <add>, %71, %cst_26 [1] : vector<8x32xf32> to vector<8xf32>
    %75 = vector.shape_cast %74 : vector<8xf32> to vector<8x1xf32>
    %cst_27 = arith.constant 3.200000e+01 : f32
    %76 = vector.broadcast %cst_27 : f32 to vector<8x1xf32>
    %77 = arith.divf %75, %76 : vector<8x1xf32>
    %78 = vector.broadcast %77 : vector<8x1xf32> to vector<8x32xf32>
    %79 = arith.subf %71, %78 : vector<8x32xf32>
    %80 = arith.mulf %79, %79 : vector<8x32xf32>
    %cst_28 = arith.constant dense<0.000000e+00> : vector<8xf32>
    %81 = vector.multi_reduction <add>, %80, %cst_28 [1] : vector<8x32xf32> to vector<8xf32>
    %82 = vector.shape_cast %81 : vector<8xf32> to vector<8x1xf32>
    %cst_29 = arith.constant 3.200000e+01 : f32
    %83 = vector.broadcast %cst_29 : f32 to vector<8x1xf32>
    %84 = arith.divf %82, %83 : vector<8x1xf32>
    %85 = vector.broadcast %77 : vector<8x1xf32> to vector<8x32xf32>
    %86 = arith.subf %71, %85 : vector<8x32xf32>
    %cst_30 = arith.constant 9.99999974E-6 : f32
    %87 = vector.broadcast %cst_30 : f32 to vector<8x1xf32>
    %88 = arith.addf %84, %87 : vector<8x1xf32>
    %89 = math.rsqrt %88 : vector<8x1xf32>
    %90 = vector.broadcast %89 : vector<8x1xf32> to vector<8x32xf32>
    %91 = arith.mulf %86, %90 : vector<8x32xf32>
    %92 = vector.broadcast %72 : vector<1x32xf32> to vector<8x32xf32>
    %93 = arith.mulf %91, %92 : vector<8x32xf32>
    %94 = vector.broadcast %73 : vector<1x32xf32> to vector<8x32xf32>
    %95 = arith.addf %93, %94 : vector<8x32xf32>
    %96 = tpu.concatenate %69, %95 in 1 : vector<8x32xf32>, vector<8x32xf32> -> vector<8x64xf32>
    %c144 = arith.constant 144 : index
    %c0_31 = arith.constant 0 : index
    %97 = vector.load %arg1[%c144, %c0_31] : memref<304x128xf32, #tpu.memory_space<vmem>>, vector<64x96xf32>
    %cst_32 = arith.constant dense<0.000000e+00> : vector<8x96xf32>
    %98 = tpu.matmul %96, %97, %cst_32 {dimension_numbers = #tpu.dot_dimension_numbers<[1], [0], [0], [1], [0, 0, 1, 1], [], []>} : vector<8x64xf32>, vector<64x96xf32>, vector<8x96xf32> -> vector<8x96xf32>
    %c10 = arith.constant 10 : index
    %c0_33 = arith.constant 0 : index
    %99 = vector.load %arg1[%c10, %c0_33] : memref<304x128xf32, #tpu.memory_space<vmem>>, vector<1x96xf32>
    %100 = vector.broadcast %99 : vector<1x96xf32> to vector<8x96xf32>
    %101 = arith.addf %98, %100 : vector<8x96xf32>
    %cst_34 = arith.constant dense<0.000000e+00> : vector<96xf32>
    %102 = vector.multi_reduction <add>, %101, %cst_34 [0] : vector<8x96xf32> to vector<96xf32>
    %103 = vector.shape_cast %102 : vector<96xf32> to vector<1x96xf32>
    %cst_35 = arith.constant 8.000000e+00 : f32
    %104 = vector.broadcast %cst_35 : f32 to vector<1x96xf32>
    %105 = arith.divf %103, %104 : vector<1x96xf32>
    %106 = vector.broadcast %105 : vector<1x96xf32> to vector<8x96xf32>
    %107 = arith.subf %101, %106 : vector<8x96xf32>
    %108 = arith.mulf %107, %107 : vector<8x96xf32>
    %cst_36 = arith.constant dense<0.000000e+00> : vector<96xf32>
    %109 = vector.multi_reduction <add>, %108, %cst_36 [0] : vector<8x96xf32> to vector<96xf32>
    %110 = vector.shape_cast %109 : vector<96xf32> to vector<1x96xf32>
    %cst_37 = arith.constant 8.000000e+00 : f32
    %111 = vector.broadcast %cst_37 : f32 to vector<1x96xf32>
    %112 = arith.divf %110, %111 : vector<1x96xf32>
    %113 = vector.broadcast %105 : vector<1x96xf32> to vector<8x96xf32>
    %114 = arith.subf %101, %113 : vector<8x96xf32>
    %cst_38 = arith.constant 9.99999974E-6 : f32
    %115 = vector.broadcast %cst_38 : f32 to vector<1x96xf32>
    %116 = arith.addf %112, %115 : vector<1x96xf32>
    %117 = math.rsqrt %116 : vector<1x96xf32>
    %118 = vector.broadcast %117 : vector<1x96xf32> to vector<8x96xf32>
    %119 = arith.mulf %114, %118 : vector<8x96xf32>
    %c11 = arith.constant 11 : index
    %c0_39 = arith.constant 0 : index
    %120 = vector.load %arg1[%c11, %c0_39] : memref<304x128xf32, #tpu.memory_space<vmem>>, vector<1x96xf32>
    %121 = vector.broadcast %120 : vector<1x96xf32> to vector<8x96xf32>
    %122 = arith.mulf %119, %121 : vector<8x96xf32>
    %c12 = arith.constant 12 : index
    %c0_40 = arith.constant 0 : index
    %123 = vector.load %arg1[%c12, %c0_40] : memref<304x128xf32, #tpu.memory_space<vmem>>, vector<1x96xf32>
    %124 = vector.broadcast %123 : vector<1x96xf32> to vector<8x96xf32>
    %125 = arith.addf %122, %124 : vector<8x96xf32>
    %cst_41 = arith.constant 0.000000e+00 : f32
    %126 = vector.broadcast %cst_41 : f32 to vector<8x96xf32>
    %127 = arith.maximumf %125, %126 : vector<8x96xf32>
    %c208 = arith.constant 208 : index
    %c0_42 = arith.constant 0 : index
    %128 = vector.load %arg1[%c208, %c0_42] : memref<304x128xf32, #tpu.memory_space<vmem>>, vector<96x50xf32>
    %cst_43 = arith.constant dense<0.000000e+00> : vector<8x50xf32>
    %129 = tpu.matmul %127, %128, %cst_43 {dimension_numbers = #tpu.dot_dimension_numbers<[1], [0], [0], [1], [0, 0, 1, 1], [], []>} : vector<8x96xf32>, vector<96x50xf32>, vector<8x50xf32> -> vector<8x50xf32>
    %c13 = arith.constant 13 : index
    %c0_44 = arith.constant 0 : index
    %130 = vector.load %arg1[%c13, %c0_44] : memref<304x128xf32, #tpu.memory_space<vmem>>, vector<1x50xf32>
    %131 = vector.broadcast %130 : vector<1x50xf32> to vector<8x50xf32>
    %132 = arith.addf %129, %131 : vector<8x50xf32>
    %133 = vector.extract_strided_slice %132 {offsets = [0, 0], sizes = [8, 21], strides = [1, 1]} : vector<8x50xf32> to vector<8x21xf32>
    %c0_45 = arith.constant 0 : index
    %c0_46 = arith.constant 0 : index
    %c0_47 = arith.constant 0 : index
    %134 = vector.load %arg2[%c0_45, %c0_46, %c0_47] : memref<2x8x21xf32, #tpu.memory_space<vmem>>, vector<1x8x21xf32>
    %135 = vector.shape_cast %134 : vector<1x8x21xf32> to vector<8x21xf32>
    %136 = vector.shape_cast %133 : vector<8x21xf32> to vector<1x8x21xf32>
    tpu.vector_store %arg2[%c0_45, %c0_46, %c0_47], %136 {strides = array<i32>} : memref<2x8x21xf32, #tpu.memory_space<vmem>>, vector<1x8x21xf32>,
    %137 = vector.extract_strided_slice %132 {offsets = [0, 21], sizes = [8, 21], strides = [1, 1]} : vector<8x50xf32> to vector<8x21xf32>
    %c1_48 = arith.constant 1 : index
    %c0_49 = arith.constant 0 : index
    %c0_50 = arith.constant 0 : index
    %138 = vector.load %arg2[%c1_48, %c0_49, %c0_50] : memref<2x8x21xf32, #tpu.memory_space<vmem>>, vector<1x8x21xf32>
    %139 = vector.shape_cast %138 : vector<1x8x21xf32> to vector<8x21xf32>
    %140 = vector.shape_cast %137 : vector<8x21xf32> to vector<1x8x21xf32>
    tpu.vector_store %arg2[%c1_48, %c0_49, %c0_50], %140 {strides = array<i32>} : memref<2x8x21xf32, #tpu.memory_space<vmem>>, vector<1x8x21xf32>,
    %141 = vector.extract_strided_slice %132 {offsets = [0, 42], sizes = [8, 4], strides = [1, 1]} : vector<8x50xf32> to vector<8x4xf32>
    %cst_51 = arith.constant 2.000000e-01 : f32
    %142 = vector.broadcast %cst_51 : f32 to vector<8x4xf32>
    %143 = arith.mulf %141, %142 : vector<8x4xf32>
    %144 = math.tanh %143 : vector<8x4xf32>
    %cst_52 = arith.constant 5.000000e+00 : f32
    %145 = vector.broadcast %cst_52 : f32 to vector<8x4xf32>
    %146 = arith.mulf %145, %144 : vector<8x4xf32>
    %147 = vector.extract_strided_slice %132 {offsets = [0, 46], sizes = [8, 4], strides = [1, 1]} : vector<8x50xf32> to vector<8x4xf32>
    %cst_53 = arith.constant 1.000000e+00 : f32
    %148 = vector.broadcast %cst_53 : f32 to vector<8x4xf32>
    %149 = arith.addf %147, %148 : vector<8x4xf32>
    %cst_54 = arith.constant 0.000000e+00 : f32
    %150 = vector.broadcast %cst_54 : f32 to vector<8x4xf32>
    %151 = arith.maximumf %149, %150 : vector<8x4xf32>
    %152 = math.absf %149 : vector<8x4xf32>
    %cst_55 = arith.constant 0.000000e+00 : f32
    %153 = vector.broadcast %cst_55 : f32 to vector<8x4xf32>
    %154 = arith.subf %153, %152 : vector<8x4xf32>
    %155 = math.exp %154 : vector<8x4xf32>
    %156 = math.log1p %155 : vector<8x4xf32>
    %157 = arith.addf %151, %156 : vector<8x4xf32>
    %cst_56 = arith.constant 1.000000e-01 : f32
    %158 = vector.broadcast %cst_56 : f32 to vector<8x4xf32>
    %159 = arith.addf %157, %158 : vector<8x4xf32>
    %c0_57 = arith.constant 0 : index
    %c0_58 = arith.constant 0 : index
    %160 = vector.load %arg3[%c0_57, %c0_58] : memref<8x8xf32, #tpu.memory_space<vmem>>, vector<8x4xf32>
    tpu.vector_store %arg3[%c0_57, %c0_58], %146 {strides = array<i32>} : memref<8x8xf32, #tpu.memory_space<vmem>>, vector<8x4xf32>,
    %c0_59 = arith.constant 0 : index
    %c4_60 = arith.constant 4 : index
    %161 = vector.load %arg3[%c0_59, %c4_60] : memref<8x8xf32, #tpu.memory_space<vmem>>, vector<8x4xf32>
    tpu.vector_store %arg3[%c0_59, %c4_60], %159 {strides = array<i32>} : memref<8x8xf32, #tpu.memory_space<vmem>>, vector<8x4xf32>,
    return
  }
}

</mosaic_0001>

<llo_original>
// kernel: value_policy_forward.1
$region0: #{value_policy_forward.1}
  #allocation0 [shape = 'u32[]', space=smem, size = 0x4, offset = 0x4, fixed_abs, tag = 'smem constant byte address 0x4 - core index']
  #allocation1 [shape = 'u32[72,128]{1,0:T(1,128)}', space=vmem, size = 0x9000, scoped, tag = 'internal scratch']
  %s0 = inlined_call_operand.hbm [shape: f32[8,32], index: 0, kind: input, shape index: {}]
  %s1 = inlined_call_operand.hbm [shape: f32[304,128], index: 1, kind: input, shape index: {}]
  %s2 = inlined_call_operand.hbm [shape: f32[2,8,21], index: 2, kind: output, shape index: {0}]
  %s3 = inlined_call_operand.hbm [shape: f32[8,8], index: 3, kind: output, shape index: {1}]
  %4 = xla_tuple %s2, %s3
  %s5 = sld [smem:[#allocation0]]
  $region34: #{value_policy_forward.1} parent=0
    _
  %s7 = ssub.s32 1, %s5
  %s8 = scalar_select 0, %s7, %s5
  $region1: #{value_policy_forward.1} parent=0
    #allocation2 [shape = 'u8[4096]{0}', space=vmem, size = 0x1000, scoped, tag = 'input window, operand 0, single buffered']
    #allocation3 [shape = 's32[1]{0}', space=sflag, size = 0x4, scoped, tag = 'scoped memory for value_policy_forward.1']
    #allocation4 [shape = 's32[1]{0}', space=sflag, size = 0x4, scoped, tag = 'scoped memory for value_policy_forward.1']
    #allocation5 [shape = 'u8[155648]{0}', space=vmem, size = 0x26000, scoped, tag = 'input window, operand 1, single buffered']
    #allocation6 [shape = 's32[1]{0}', space=sflag, size = 0x4, scoped, tag = 'scoped memory for value_policy_forward.1']
    #allocation7 [shape = 'u8[8192]{0}', space=vmem, size = 0x2000, scoped, tag = 'output window, operand 0, single buffered']
    #allocation8 [shape = 'u8[4096]{0}', space=vmem, size = 0x1000, scoped, tag = 'output window, operand 1, single buffered']
    #allocation9 [shape = 's32[1]{0}', space=sflag, size = 0x4, scoped, tag = 'scoped memory for value_policy_forward.1']
    %9 = vsyncpa [#allocation3], 0
    %10 = vsyncpa [#allocation6], 0
    %11 = vsyncpa [#allocation4], 0
    %12 = vsyncpa [#allocation9], 0
    // Predicated region
    $region2: #{value_policy_forward.1} parent=1 // pred_check
      _
    $region3: #{value_policy_forward.1} parent=1 // pred_check_branch
      %14 = sbr.rel (0) target = $region5
    $region4: #{value_policy_forward.1} parent=1 // pred_region
      %16 = vsyncadd [#allocation3], 0
      %s18 = sshll.u32 %s0, 4
      %s19 = int_to_ptr.hbm [resolvable:$true] %s18
      %s20 = sshll.u32 [#allocation2], 4
      %s21 = int_to_ptr.vmem [resolvable:$true] %s20
      %23 = dma.hbm_to_vmem [thread:$0]  %s19, 128, %s21, [#allocation3]
    $region5: #{value_policy_forward.1} parent=1 // pred_fallthru
      _
    // Predicated region
    $region6: #{value_policy_forward.1} parent=1 // pred_check
      _
    $region7: #{value_policy_forward.1} parent=1 // pred_check_branch
      %25 = sbr.rel (0) target = $region9
    $region8: #{value_policy_forward.1} parent=1 // pred_region
      %27 = vsyncadd [#allocation6], 0
      %s28 = sshll.u32 %s1, 4
      %s29 = int_to_ptr.hbm [resolvable:$true] %s28
      %s30 = sshll.u32 [#allocation5], 4
      %s31 = int_to_ptr.vmem [resolvable:$true] %s30
      %36 = dma.hbm_to_vmem [thread:$0]  %s29, 4864, %s31, [#allocation6], 128, 128, 8
    $region9: #{value_policy_forward.1} parent=1 // pred_fallthru
      _
    // Predicated region
    $region10: #{value_policy_forward.1} parent=1 // pred_check
      _
    $region11: #{value_policy_forward.1} parent=1 // pred_check_branch
      %38 = sbr.rel (0) target = $region13
    $region12: #{value_policy_forward.1} parent=1 // pred_region
      %40 = dma.done [#allocation3], 128
    $region13: #{value_policy_forward.1} parent=1 // pred_fallthru
      _
    // Predicated region
    $region14: #{value_policy_forward.1} parent=1 // pred_check
      _
    $region15: #{value_policy_forward.1} parent=1 // pred_check_branch
      %42 = sbr.rel (0) target = $region17
    $region16: #{value_policy_forward.1} parent=1 // pred_region
      %44 = dma.done [#allocation6], 4864
    $region17: #{value_policy_forward.1} parent=1 // pred_fallthru
      _
    %v45 = vld [vmem:[#allocation2] sm:$0xff]
    %vm46 = vcmask 261120
    %v47 = vsel %vm46, %v45, 0.0
    %48 = vadd.xlane.f32.xlu0 %v47
    %v49 = vpop.xlane.xlu0 %48
    %v50 = vrcp.pop 32.0
    %v51 = vmul.f32 32.0, %v50
    %v52 = vsub.f32 1.0, %v51
    %v53 = vmul.f32 %v50, %v52
    %v54 = vadd.f32 %v50, %v53
    %vm55 = vweird.f32 %v50
    %v56 = vsel %vm55, %v50, %v54
    %v57 = vmul.f32 %v49, %v56
    %v58 = vsub.f32 %v45, %v57
    %v59 = vmul.f32 %v58, %v58
    %v60 = vsel %vm46, %v59, 0.0
    %61 = vadd.xlane.f32.xlu0 %v60
    %v62 = vpop.xlane.xlu0 %61
    %v63 = vmul.f32 %v62, %v56
    %v64 = vadd.f32 %v63, 1e-05
    %v65 = vrsqrt.pop %v64
    %v66 = vmul.f32 %v65, %v64
    %v67 = vmul.f32 %v66, %v65
    %v68 = vmul.f32 0.5, %v67
    %v69 = vsub.f32 1.5, %v68
    %v70 = vmul.f32 %v65, %v69
    %vm71 = vweird.f32 %v64
    %vm72 = vweird.f32 %v65
    %vm73 = vmor %vm71, %vm72
    %v74 = vsel %vm73, %v65, %v70
    %v75 = vmul.f32 %v58, %v74
    %v76 = vld [vmem:[#allocation5] sm:$0x1]
    %v77 = vperm.slane %v76, 0
    %v78 = vmul.f32 %v75, %v77
    %v79 = vld [vmem:[#allocation5 + $0x1] sm:$0x1]
    %v80 = vperm.slane %v79, 0
    %v81 = vadd.f32 %v78, %v80
    %v82 = vld [vmem:[#allocation5 + $0x2] sm:$0x1]
    %v83 = vperm.slane %v82, 0
    %v84 = vmul.f32 %v75, %v83
    %v85 = vld [vmem:[#allocation5 + $0x3] sm:$0x1]
    %v86 = vperm.slane %v85, 0
    %v87 = vadd.f32 %v84, %v86
    %89 = vrot.lane.b32.xlu0 %v87, 32
    %v90 = vpop.permute.xlu0 %89
    %v92 = vsel %vm46, %v81, %v90
    %v93 = vld [vmem:[#allocation5 + $0x10] sm:$0xff]
    %v94 = vld [vmem:[#allocation5 + $0x18] sm:$0xff]
    %v95 = vld [vmem:[#allocation5 + $0x20] sm:$0xff]
    %v96 = vld [vmem:[#allocation5 + $0x28] sm:$0xff]
    %v97 = vld [vmem:[#allocation5 + $0x30] sm:$0xff]
    %v98 = vld [vmem:[#allocation5 + $0x38] sm:$0xff]
    %v99 = vld [vmem:[#allocation5 + $0x40] sm:$0xff]
    %v100 = vld [vmem:[#allocation5 + $0x48] sm:$0xff]
    %v101 = vld [vmem:[#allocation5 + $0x8] sm:$0x1]
    %v102 = vperm.slane %v101, 0
    %vm103 = vcmask 523264
    %v105 = vsel %vm103, %v92, 0
    %107 = vmatpush.msra.mxu0 0.0
    %108 = vmatpush.msra.mxu0 0.0
    %109 = vmatpush.msra.mxu0 0.0
    %110 = vmatpush.msra.mxu0 0.0
    %111 = vmatpush.msra.mxu0 0.0
    %112 = vmatpush.msra.mxu0 0.0
    %113 = vmatpush.msra.mxu0 0.0
    %114 = vmatpush.msra.mxu0 0.0
    %115 = vmatpush.msra.mxu0 %v100
    %116 = vmatpush.msra.mxu0 %v99
    %117 = vmatpush.msra.mxu0 %v98
    %118 = vmatpush.msra.mxu0 %v97
    %119 = vmatpush.msra.mxu0 %v96
    %120 = vmatpush.msra.mxu0 %v95
    %121 = vmatpush.msra.mxu0 %v94
    %122 = vmatpush.msra.mxu0 %v93
    %123 = vmatmul.f32.gmra.mxu0 %v105
    %v124 = vpop.f32.mrf.mxu0
    %v125 = vadd.f32 %v102, %v124
    %126 = vdwg.mxu0
    %v127 = vmax.f32 %v125, 0.0
    %v128 = vld [vmem:[#allocation5 + $0x50] sm:$0xff]
    %v129 = vld [vmem:[#allocation5 + $0x58] sm:$0xff]
    %v130 = vld [vmem:[#allocation5 + $0x60] sm:$0xff]
    %v131 = vld [vmem:[#allocation5 + $0x68] sm:$0xff]
    %v132 = vld [vmem:[#allocation5 + $0x70] sm:$0xff]
    %v133 = vld [vmem:[#allocation5 + $0x78] sm:$0xff]
    %v134 = vld [vmem:[#allocation5 + $0x80] sm:$0xff]
    %v135 = vld [vmem:[#allocation5 + $0x88] sm:$0xff]
    %v136 = vld [vmem:[#allocation5 + $0x9] sm:$0x1]
    %v137 = vperm.slane %v136, 0
    %v139 = vsel %vm103, %v127, 0
    %141 = vmatpush.msra.mxu0 0.0
    %142 = vmatpush.msra.mxu0 0.0
    %143 = vmatpush.msra.mxu0 0.0
    %144 = vmatpush.msra.mxu0 0.0
    %145 = vmatpush.msra.mxu0 0.0
    %146 = vmatpush.msra.mxu0 0.0
    %147 = vmatpush.msra.mxu0 0.0
    %148 = vmatpush.msra.mxu0 0.0
    %149 = vmatpush.msra.mxu0 %v135
    %150 = vmatpush.msra.mxu0 %v134
    %151 = vmatpush.msra.mxu0 %v133
    %152 = vmatpush.msra.mxu0 %v132
    %153 = vmatpush.msra.mxu0 %v131
    %154 = vmatpush.msra.mxu0 %v130
    %155 = vmatpush.msra.mxu0 %v129
    %156 = vmatpush.msra.mxu0 %v128
    %157 = vmatmul.f32.gmra.mxu0 %v139
    %v158 = vpop.f32.mrf.mxu0
    %v159 = vadd.f32 %v137, %v158
    %160 = vdwg.mxu0
    %v161 = vadd.f32 %v159, %v45
    %v162 = vld [vmem:[#allocation5 + $0x4] sm:$0x1]
    %v163 = vld [vmem:[#allocation5 + $0x5] sm:$0x1]
    %v164 = vsel %vm46, %v161, 0.0
    %165 = vadd.xlane.f32.xlu0 %v164
    %v166 = vpop.xlane.xlu0 %165
    %v167 = vmul.f32 %v166, %v56
    %v168 = vsub.f32 %v161, %v167
    %v169 = vmul.f32 %v168, %v168
    %v170 = vsel %vm46, %v169, 0.0
    %171 = vadd.xlane.f32.xlu0 %v170
    %v172 = vpop.xlane.xlu0 %171
    %v173 = vmul.f32 %v172, %v56
    %v174 = vadd.f32 %v173, 1e-05
    %v175 = vrsqrt.pop %v174
    %v176 = vmul.f32 %v175, %v174
    %v177 = vmul.f32 %v176, %v175
    %v178 = vmul.f32 0.5, %v177
    %v179 = vsub.f32 1.5, %v178
    %v180 = vmul.f32 %v175, %v179
    %vm181 = vweird.f32 %v174
    %vm182 = vweird.f32 %v175
    %vm183 = vmor %vm181, %vm182
    %v184 = vsel %vm183, %v175, %v180
    %v185 = vmul.f32 %v168, %v184
    %v186 = vperm.slane %v162, 0
    %v187 = vmul.f32 %v185, %v186
    %v188 = vperm.slane %v163, 0
    %v189 = vadd.f32 %v187, %v188
    %191 = vrot.lane.b32.xlu0 %v45, 32
    %v192 = vpop.permute.xlu0 %191
    %v194 = vadd.f32 %v159, %v192
    %v195 = vld [vmem:[#allocation5 + $0x6] sm:$0x1]
    %v196 = vld [vmem:[#allocation5 + $0x7] sm:$0x1]
    %198 = vrot.lane.b32.xlu0 %v194, 96
    %v199 = vpop.permute.xlu0 %198
    %v201 = vsel %vm46, %v199, 0.0
    %202 = vadd.xlane.f32.xlu0 %v201
    %v203 = vpop.xlane.xlu0 %202
    %v204 = vmul.f32 %v203, %v56
    %v205 = vsub.f32 %v194, %v204
    %v206 = vmul.f32 %v205, %v205
    %208 = vrot.lane.b32.xlu0 %v206, 96
    %v209 = vpop.permute.xlu0 %208
    %v211 = vsel %vm46, %v209, 0.0
    %212 = vadd.xlane.f32.xlu0 %v211
    %v213 = vpop.xlane.xlu0 %212
    %v214 = vmul.f32 %v213, %v56
    %v215 = vadd.f32 %v214, 1e-05
    %v216 = vrsqrt.pop %v215
    %v217 = vmul.f32 %v216, %v215
    %v218 = vmul.f32 %v217, %v216
    %v219 = vmul.f32 0.5, %v218
    %v220 = vsub.f32 1.5, %v219
    %v221 = vmul.f32 %v216, %v220
    %vm222 = vweird.f32 %v215
    %vm223 = vweird.f32 %v216
    %vm224 = vmor %vm222, %vm223
    %v225 = vsel %vm224, %v216, %v221
    %v226 = vmul.f32 %v205, %v225
    %v227 = vperm.slane %v195, 0
    %229 = vrot.lane.b32.xlu0 %v227, 32
    %v230 = vpop.permute.xlu0 %229
    %v232 = vmul.f32 %v226, %v230
    %v233 = vperm.slane %v196, 0
    %235 = vrot.lane.b32.xlu0 %v233, 32
    %v236 = vpop.permute.xlu0 %235
    %v238 = vadd.f32 %v232, %v236
    %v239 = vsel %vm46, %v189, %v238
    %v240 = vld [vmem:[#allocation5 + $0x90] sm:$0xff]
    %v241 = vld [vmem:[#allocation5 + $0x98] sm:$0xff]
    %v242 = vld [vmem:[#allocation5 + $0xa0] sm:$0xff]
    %v243 = vld [vmem:[#allocation5 + $0xa8] sm:$0xff]
    %v244 = vld [vmem:[#allocation5 + $0xb0] sm:$0xff]
    %v245 = vld [vmem:[#allocation5 + $0xb8] sm:$0xff]
    %v246 = vld [vmem:[#allocation5 + $0xc0] sm:$0xff]
    %v247 = vld [vmem:[#allocation5 + $0xc8] sm:$0xff]
    %v248 = vld [vmem:[#allocation5 + $0xa] sm:$0x1]
    %v249 = vperm.slane %v248, 0
    %v251 = vsel %vm103, %v239, 0
    %253 = vmatpush.msra.mxu0 0.0
    %254 = vmatpush.msra.mxu0 0.0
    %255 = vmatpush.msra.mxu0 0.0
    %256 = vmatpush.msra.mxu0 0.0
    %257 = vmatpush.msra.mxu0 0.0
    %258 = vmatpush.msra.mxu0 0.0
    %259 = vmatpush.msra.mxu0 0.0
    %260 = vmatpush.msra.mxu0 0.0
    %261 = vmatpush.msra.mxu0 %v247
    %262 = vmatpush.msra.mxu0 %v246
    %263 = vmatpush.msra.mxu0 %v245
    %264 = vmatpush.msra.mxu0 %v244
    %265 = vmatpush.msra.mxu0 %v243
    %266 = vmatpush.msra.mxu0 %v242
    %267 = vmatpush.msra.mxu0 %v241
    %268 = vmatpush.msra.mxu0 %v240
    %269 = vmatmul.f32.gmra.mxu0 %v251
    %v270 = vpop.f32.mrf.mxu0
    %v271 = vadd.f32 %v249, %v270
    %272 = vdwg.mxu0
    %vm273 = vcmask 785408
    %v274 = vsel %vm273, %v271, 0.0
    %v275 = vrot.slane %v274, 4
    %v276 = vadd.f32 %v274, %v275
    %v277 = vrot.slane %v276, 2
    %v278 = vadd.f32 %v276, %v277
    %v279 = vrot.slane %v278, 1
    %v280 = vadd.f32 %v278, %v279
    %v281 = vrcp.pop 8.0
    %v282 = vmul.f32 8.0, %v281
    %v283 = vsub.f32 1.0, %v282
    %v284 = vmul.f32 %v281, %v283
    %v285 = vadd.f32 %v281, %v284
    %vm286 = vweird.f32 %v281
    %v287 = vsel %vm286, %v281, %v285
    %v288 = vmul.f32 %v280, %v287
    %v289 = vsub.f32 %v271, %v288
    %v290 = vmul.f32 %v289, %v289
    %v291 = vsel %vm273, %v290, 0.0
    %v292 = vrot.slane %v291, 4
    %v293 = vadd.f32 %v291, %v292
    %v294 = vrot.slane %v293, 2
    %v295 = vadd.f32 %v293, %v294
    %v296 = vrot.slane %v295, 1
    %v297 = vadd.f32 %v295, %v296
    %v298 = vmul.f32 %v297, %v287
    %v299 = vadd.f32 %v298, 1e-05
    %v300 = vrsqrt.pop %v299
    %v301 = vmul.f32 %v300, %v299
    %v302 = vmul.f32 %v301, %v300
    %v303 = vmul.f32 0.5, %v302
    %v304 = vsub.f32 1.5, %v303
    %v305 = vmul.f32 %v300, %v304
    %vm306 = vweird.f32 %v299
    %vm307 = vweird.f32 %v300
    %vm308 = vmor %vm306, %vm307
    %v309 = vsel %vm308, %v300, %v305
    %v310 = vmul.f32 %v289, %v309
    %v311 = vld [vmem:[#allocation5 + $0xb] sm:$0x1]
    %v312 = vperm.slane %v311, 0
    %v313 = vmul.f32 %v310, %v312
    %v314 = vld [vmem:[#allocation5 + $0xc] sm:$0x1]
    %v315 = vperm.slane %v314, 0
    %v316 = vadd.f32 %v313, %v315
    %v317 = vmax.f32 %v316, 0.0
    %v318 = vld [vmem:[#allocation5 + $0xd0] sm:$0xff]
    %v319 = vld [vmem:[#allocation5 + $0xd8] sm:$0xff]
    %v320 = vld [vmem:[#allocation5 + $0xe0] sm:$0xff]
    %v321 = vld [vmem:[#allocation5 + $0xe8] sm:$0xff]
    %v322 = vld [vmem:[#allocation5 + $0xf0] sm:$0xff]
    %v323 = vld [vmem:[#allocation5 + $0xf8] sm:$0xff]
    %v324 = vld [vmem:[#allocation5 + $0x100] sm:$0xff]
    %v325 = vld [vmem:[#allocation5 + $0x108] sm:$0xff]
    %v326 = vld [vmem:[#allocation5 + $0x110] sm:$0xff]
    %v327 = vld [vmem:[#allocation5 + $0x118] sm:$0xff]
    %v328 = vld [vmem:[#allocation5 + $0x120] sm:$0xff]
    %v329 = vld [vmem:[#allocation5 + $0x128] sm:$0xff]
    %v330 = vld [vmem:[#allocation5 + $0xd] sm:$0x1]
    %v331 = vperm.slane %v330, 0
    %v333 = vsel %vm273, %v317, 0
    %335 = vmatpush.msra.mxu0 0.0
    %336 = vmatpush.msra.mxu0 0.0
    %337 = vmatpush.msra.mxu0 0.0
    %338 = vmatpush.msra.mxu0 0.0
    %339 = vmatpush.msra.mxu0 %v329
    %340 = vmatpush.msra.mxu0 %v328
    %341 = vmatpush.msra.mxu0 %v327
    %342 = vmatpush.msra.mxu0 %v326
    %343 = vmatpush.msra.mxu0 %v325
    %344 = vmatpush.msra.mxu0 %v324
    %345 = vmatpush.msra.mxu0 %v323
    %346 = vmatpush.msra.mxu0 %v322
    %347 = vmatpush.msra.mxu0 %v321
    %348 = vmatpush.msra.mxu0 %v320
    %349 = vmatpush.msra.mxu0 %v319
    %350 = vmatpush.msra.mxu0 %v318
    %351 = vmatmul.f32.gmra.mxu0 %v333
    %v352 = vpop.f32.mrf.mxu0
    %v353 = vadd.f32 %v331, %v352
    %354 = vdwg.mxu0
    %vm355 = vcmask 171008
    %356 = vst.msk [vmem:[#allocation7] sm:$0xff] %vm355, %v353
    %358 = vrot.lane.b32.xlu0 %v353, 107
    %v359 = vpop.permute.xlu0 %358
    %s361 = scalar_lea.vmem [#allocation7], 8
    %362 = vst.msk [vmem:[%s361] sm:$0xff] %vm355, %v359
    %v363 = vmul.f32 %v353, 0.2
    %v364 = vtanh.pop %v363
    %v365 = vmul.f32 %v364, 5.0
    %v366 = vadd.f32 %v353, 1.0
    %v367 = vmax.f32 %v366, 0.0
    %v368 = vand.u32 2147483647, %v366
    %v369 = vsub.f32 0.0, %v368
    %v370 = vmul.f32 %v369, 1.442695
    %v371 = vpow.pop %v370
    %v372 = vadd.f32 %v371, 1.0
    %v373 = vlog2.pop %v372
    %v374 = vmul.f32 %v373, 0.6931472
    %v375 = vmul.f32 -0.5, %v371
    %v376 = vadd.f32 %v375, 1.0
    %v377 = vmul.f32 %v376, %v371
    %v378 = vand.u32 2147483647, %v371
    %vm379 = vcmp.lt.f32.partialorder %v378, 0.0004427343
    %v380 = vsel %vm379, %v377, %v374
    %v381 = vadd.f32 %v367, %v380
    %v382 = vadd.f32 %v381, 0.1
    %384 = vrot.lane.b32.xlu0 %v365, 86
    %v385 = vpop.permute.xlu0 %384
    %vm387 = vcmask 31744
    %388 = vst.msk [vmem:[#allocation8] sm:$0xff] %vm387, %v385
    %390 = vrot.lane.b32.xlu0 %v382, 86
    %v391 = vpop.permute.xlu0 %390
    %vm393 = vcmask 64544
    %394 = vst.msk [vmem:[#allocation8] sm:$0xff] %vm393, %v391
    // Predicated region
    $region18: #{value_policy_forward.1} parent=1 // pred_check
      _
    $region19: #{value_policy_forward.1} parent=1 // pred_check_branch
      %396 = sbr.rel (0) target = $region21
    $region20: #{value_policy_forward.1} parent=1 // pred_region
      %398 = vsyncadd [#allocation4], 0
      %s399 = sshll.u32 [#allocation7], 4
      %s400 = int_to_ptr.vmem [resolvable:$true] %s399
      %s401 = sshll.u32 %s2, 4
      %s402 = int_to_ptr.hbm [resolvable:$true] %s401
      %407 = dma.vmem_to_hbm [thread:$0]  %s400, 256, %s402, [#allocation4], 128, 128, 8
    $region21: #{value_policy_forward.1} parent=1 // pred_fallthru
      _
    // Predicated region
    $region22: #{value_policy_forward.1} parent=1 // pred_check
      _
    $region23: #{value_policy_forward.1} parent=1 // pred_check_branch
      %409 = sbr.rel (0) target = $region25
    $region24: #{value_policy_forward.1} parent=1 // pred_region
      %411 = vsyncadd [#allocation9], 0
      %s413 = sshll.u32 [#allocation8], 4
      %s414 = int_to_ptr.vmem [resolvable:$true] %s413
      %s415 = sshll.u32 %s3, 4
      %s416 = int_to_ptr.hbm [resolvable:$true] %s415
      %418 = dma.vmem_to_hbm [thread:$0]  %s414, 128, %s416, [#allocation9]
    $region25: #{value_policy_forward.1} parent=1 // pred_fallthru
      _
    // Predicated region
    $region26: #{value_policy_forward.1} parent=1 // pred_check
      _
    $region27: #{value_policy_forward.1} parent=1 // pred_check_branch
      %420 = sbr.rel (0) target = $region29
    $region28: #{value_policy_forward.1} parent=1 // pred_region
      %422 = dma.done [#allocation4], 256
    $region29: #{value_policy_forward.1} parent=1 // pred_fallthru
      _
    // Predicated region
    $region30: #{value_policy_forward.1} parent=1 // pred_check
      _
    $region31: #{value_policy_forward.1} parent=1 // pred_check_branch
      %424 = sbr.rel (0) target = $region33
    $region32: #{value_policy_forward.1} parent=1 // pred_region
      %426 = dma.done [#allocation9], 128
    $region33: #{value_policy_forward.1} parent=1 // pred_fallthru
      _
    %427 = vsyncpa [#allocation3], 1
    %428 = vsyncpa [#allocation6], 1
    %429 = vsyncpa [#allocation4], 1
    %430 = vsyncpa [#allocation9], 1

</llo_original>
